<compile_context>
chip_gen: v5e
topology: v5e:2x2
jax: 0.10.0
libtpu: 0.0.40
codegen_flags: <defaults>
</compile_context>

<pallas_src>
import functools
import math

import jax
import jax.numpy as jnp
from jax.experimental import pallas as pl
from jax.experimental.pallas import tpu as pltpu

_LANE = 128
_SUBLANE = 8


def _round_up(n, m):
    return ((n + m - 1) // m) * m


def _pad_to(a, shape):
    out = jnp.zeros(shape, a.dtype)
    return out.at[tuple(slice(0, s) for s in a.shape)].set(a)


def prepare_params(params, *, compute_dtype=jnp.float32):
    """Pad + fuse the 10 Linear parameters ONCE (done outside the hot path).

    Returns ((w1p, b1p, wh1, bh1, w2, b2), number_of_outputs) where
      w1p : (I, 128)        b1p : (1, 128)    f32
      wh1 : (128, 256)      bh1 : (1, 256)    [advantage | value] head, layer 1
      w2  : (256, 8)        b2  : (1, 8)      cols 0..O-1 -> a+v, col O -> sum(a)
    Weights are stored in `compute_dtype`; biases stay f32 (f32 tail).
    """
    w1, b1, wa1, ba1, wa2, ba2, wv1, bv1, wv2, bv2 = params
    I, H = w1.shape
    O = wa2.shape[1]
    HP = _round_up(H, _LANE)
    H2 = 2 * HP
    OPout = _round_up(O + 1, _SUBLANE)   # O q-columns + 1 rowsum(a) column

    w1p = _pad_to(w1, (I, HP)).astype(compute_dtype)
    b1p = _pad_to(b1, (1, HP)).astype(jnp.float32)

    # Fused head, layer 1: g = tanh(h @ wh1 + bh1); g[:, :HP]=adv, g[:, HP:]=val.
    wh1 = jnp.zeros((HP, H2), jnp.float32)
    wh1 = wh1.at[:H, :H].set(wa1)
    wh1 = wh1.at[:H, HP:HP + H].set(wv1)
    wh1 = wh1.astype(compute_dtype)
    bh1 = jnp.zeros((1, H2), jnp.float32)
    bh1 = bh1.at[:, :H].set(ba1)
    bh1 = bh1.at[:, HP:HP + H].set(bv1)

    # Fused head, layer 2: out = g @ w2 + b2.
    #   cols 0..O-1 : a + v   (value weight replicated across the O columns)
    #   col  O      : per-row sum(a)  (value half zero, bias = sum(ba2))
    w2 = jnp.zeros((H2, OPout), jnp.float32)
    w2 = w2.at[:H, :O].set(wa2)
    w2 = w2.at[:H, O].set(jnp.sum(wa2, axis=1))
    w2 = w2.at[HP:HP + H, :O].set(jnp.broadcast_to(wv2, (H, O)))
    w2 = w2.astype(compute_dtype)
    b2 = jnp.zeros((1, OPout), jnp.float32)
    b2 = b2.at[:, :O].set(ba2 + bv2[0, 0])
    b2 = b2.at[:, O].set(jnp.sum(ba2))

    return (w1p, b1p, wh1, bh1, w2, b2), O


def _dueling_kernel(x_ref, w1_ref, b1_ref, wh1_ref, bh1_ref, w2_ref, b2_ref,
                    out_ref, *, compute_dtype):
    f32 = jnp.float32

    x = x_ref[...]
    if x.dtype != compute_dtype:
        x = x.astype(compute_dtype)          # bf16 cast in-kernel (no HBM copy)

    # Trunk: bias-add / tanh kept in f32 (v5e has no bf16 VPU/EUP).
    h = jnp.tanh(jnp.dot(x, w1_ref[...], preferred_element_type=f32)
                 + b1_ref[...])

    # Fused advantage|value hidden layer: one (TB,128)x(128,256) matmul + tanh.
    g = jnp.tanh(jnp.dot(h.astype(compute_dtype), wh1_ref[...],
                         preferred_element_type=f32) + bh1_ref[...])

    # Fused output layer: cols 0..O-1 = a+v, col O = per-row sum(a).
    out = jnp.dot(g.astype(compute_dtype), w2_ref[...],
                  preferred_element_type=f32) + b2_ref[...]
    out_ref[...] = out.astype(out_ref.dtype)


def dueling_forward(x, prepped, *, n_outputs, tile_b=4096, out_dtype=None):
    """Dueling-DQN forward. x: (B, I); prepped from prepare_params()."""
    w1p, b1p, wh1, bh1, w2, b2 = prepped
    compute_dtype = w1p.dtype
    B, I = x.shape
    HP = w1p.shape[1]
    H2 = wh1.shape[1]
    OPout = w2.shape[1]
    O = n_outputs

    if out_dtype is None:
        out_dtype = jnp.float32 if compute_dtype == jnp.float32 else jnp.bfloat16

    # Single grid step (block == whole batch, no x padding) whenever it fits;
    # otherwise tile on an 8-aligned TB and zero-pad the ragged tail.
    tile_b = _round_up(tile_b, _SUBLANE)
    if B <= tile_b:
        TB, BP, xp = B, B, x
    else:
        TB = tile_b
        BP = _round_up(B, TB)
        xp = _pad_to(x, (BP, I)) if BP != B else x
    grid = (BP // TB,)

    csize = jnp.dtype(compute_dtype).itemsize
    cost = pl.CostEstimate(
        flops=2 * BP * (I * HP + HP * H2 + H2 * OPout),
        transcendentals=3 * BP * HP,
        bytes_accessed=(BP * I * x.dtype.itemsize
                        + (I * HP + HP * H2 + H2 * OPout) * csize
                        + (HP + H2 + OPout) * 4
                        + BP * OPout * jnp.dtype(out_dtype).itemsize),
    )

    const = lambda i: (0, 0)
    out = pl.pallas_call(
        functools.partial(_dueling_kernel, compute_dtype=compute_dtype),
        out_shape=jax.ShapeDtypeStruct((BP, OPout), out_dtype),
        grid=grid,
        in_specs=[
            pl.BlockSpec((TB, I), lambda i: (i, 0)),   # x tile (pipelined)
            pl.BlockSpec((I, HP), const),              # W1      (resident)
            pl.BlockSpec((1, HP), const),              # b1
            pl.BlockSpec((HP, H2), const),             # fused [Wa1 | Wv1]
            pl.BlockSpec((1, H2), const),              # fused [ba1 | bv1]
            pl.BlockSpec((H2, OPout), const),          # fused [Wa2 ; Wv2] + sum col
            pl.BlockSpec((1, OPout), const),           # fused bias
        ],
        out_specs=pl.BlockSpec((TB, OPout), lambda i: (i, 0)),
        compiler_params=pltpu.CompilerParams(
            dimension_semantics=("parallel",),
        ),
        cost_estimate=cost,
    )(xp, w1p, b1p, wh1, bh1, w2, b2)

    # Global-mean finalize: column O of the kernel output is per-row sum(a),
    # computed by the fused matmul itself; one tiny XLA reduction finishes it.
    q_pre = out[:B, :O].astype(jnp.float32)
    mean_a = jnp.sum(out[:B, O].astype(jnp.float32)) / (B * O)
    return q_pre - mean_a


def init_params(key, number_of_inputs, hidden_layer, number_of_outputs):
    """Deterministic init mirroring PyTorch nn.Linear defaults, stored (in, out)."""
    keys = jax.random.split(key, 10)

    def linear_init(kw, kb, fan_in, fan_out):
        bound_w = math.sqrt(3.0 / fan_in)            # kaiming_uniform(a=sqrt(5))
        w = jax.random.uniform(kw, (fan_in, fan_out), jnp.float32,
                               minval=-bound_w, maxval=bound_w)
        bound_b = 1.0 / math.sqrt(fan_in)
        b = jax.random.uniform(kb, (1, fan_out), jnp.float32,
                               minval=-bound_b, maxval=bound_b)
        return w, b

    w1, b1 = linear_init(keys[0], keys[1], number_of_inputs, hidden_layer)
    wa1, ba1 = linear_init(keys[2], keys[3], hidden_layer, hidden_layer)
    wa2, ba2 = linear_init(keys[4], keys[5], hidden_layer, number_of_outputs)
    wv1, bv1 = linear_init(keys[6], keys[7], hidden_layer, hidden_layer)
    wv2, bv2 = linear_init(keys[8], keys[9], hidden_layer, 1)
    return (w1, b1, wa1, ba1, wa2, ba2, wv1, bv1, wv2, bv2)


def reference_forward(x, params):
    w1, b1, wa1, ba1, wa2, ba2, wv1, bv1, wv2, bv2 = params
    with jax.default_matmul_precision("highest"):
        h = jnp.tanh(x @ w1 + b1)
        a = jnp.tanh(h @ wa1 + ba1) @ wa2 + ba2
        v = jnp.tanh(h @ wv1 + bv1) @ wv2 + bv2
        return v + a - jnp.mean(a)


if __name__ == "__main__":
    # Small, module-consistent shapes: batch=8, inputs=16, hidden=32, outputs=4
    B, N_IN, N_HID, N_OUT = 8, 16, 32, 4

    key = jax.random.PRNGKey(0)
    kx, kx2, kp = jax.random.split(key, 3)
    x = jax.random.normal(kx, (B, N_IN), jnp.float32)
    params = init_params(kp, N_IN, N_HID, N_OUT)
    ref = reference_forward(x, params)

    # f32 path, single grid step (block == whole batch).
    prepped, n_out = prepare_params(params)
    fwd = jax.jit(functools.partial(dueling_forward, n_outputs=n_out))
    out = jax.block_until_ready(fwd(x, prepped))
    assert out.shape == (B, N_OUT)
    assert jnp.allclose(out, ref, atol=1e-2, rtol=1e-2), \
        float(jnp.max(jnp.abs(out - ref)))

    # Multi-tile path (grid > 1, ragged batch zero-padded) to exercise the
    # pipelined grid and the masked global-mean finalize.
    B2 = 300
    x2 = jax.random.normal(kx2, (B2, N_IN), jnp.float32)
    ref2 = reference_forward(x2, params)
    out2 = jax.block_until_ready(
        dueling_forward(x2, prepped, n_outputs=n_out, tile_b=128))
    assert out2.shape == (B2, N_OUT)
    assert jnp.allclose(out2, ref2, atol=1e-2, rtol=1e-2), \
        float(jnp.max(jnp.abs(out2 - ref2)))

    # bf16 storage/compute path (halves HBM traffic for weights/output) — loose check.
    prepped_bf16, _ = prepare_params(params, compute_dtype=jnp.bfloat16)
    out_bf = jax.block_until_ready(
        dueling_forward(x, prepped_bf16, n_outputs=n_out))
    assert out_bf.shape == (B, N_OUT)
    assert jnp.allclose(out_bf, ref, atol=1e-1, rtol=1e-1)

    print("KERNEL_OK")
</pallas_src>

<mosaic_0001>
module attributes {stable_mosaic.version = 11 : i64} {
  func.func @_dueling_kernel(%arg0: i32, %arg1: memref<8x16xf32, #tpu.memory_space<vmem>>, %arg2: memref<16x128xf32, #tpu.memory_space<vmem>>, %arg3: memref<1x128xf32, #tpu.memory_space<vmem>>, %arg4: memref<128x256xf32, #tpu.memory_space<vmem>>, %arg5: memref<1x256xf32, #tpu.memory_space<vmem>>, %arg6: memref<256x8xf32, #tpu.memory_space<vmem>>, %arg7: memref<1x8xf32, #tpu.memory_space<vmem>>, %arg8: memref<8x8xf32, #tpu.memory_space<vmem>>) attributes {dimension_semantics = [#tpu.dimension_semantics<parallel>], iteration_bounds = array<i64: 1>, scalar_prefetch = 0 : i64, scratch_operands = 0 : i64, tpu.core_type = #tpu.core_type<tc>, window_params = [{transform_indices = @transform_0, window_bounds = array<i64: 8, 16>}, {pipeline_mode = #tpu.pipeline_mode<synchronous>, transform_indices = @transform_1, window_bounds = array<i64: 16, 128>}, {pipeline_mode = #tpu.pipeline_mode<synchronous>, transform_indices = @transform_2, window_bounds = array<i64: 1, 128>}, {pipeline_mode = #tpu.pipeline_mode<synchronous>, transform_indices = @transform_3, window_bounds = array<i64: 128, 256>}, {pipeline_mode = #tpu.pipeline_mode<synchronous>, transform_indices = @transform_4, window_bounds = array<i64: 1, 256>}, {pipeline_mode = #tpu.pipeline_mode<synchronous>, transform_indices = @transform_5, window_bounds = array<i64: 256, 8>}, {pipeline_mode = #tpu.pipeline_mode<synchronous>, transform_indices = @transform_6, window_bounds = array<i64: 1, 8>}, {transform_indices = @transform_7, window_bounds = array<i64: 8, 8>}]} {
    %c0 = arith.constant 0 : index
    %c0_0 = arith.constant 0 : index
    %0 = vector.load %arg1[%c0, %c0_0] : memref<8x16xf32, #tpu.memory_space<vmem>>, vector<8x16xf32>
    %c0_1 = arith.constant 0 : index
    %c0_2 = arith.constant 0 : index
    %1 = vector.load %arg2[%c0_1, %c0_2] : memref<16x128xf32, #tpu.memory_space<vmem>>, vector<16x128xf32>
    %cst = arith.constant dense<0.000000e+00> : vector<8x128xf32>
    %2 = tpu.matmul %0, %1, %cst {dimension_numbers = #tpu.dot_dimension_numbers<[1], [0], [0], [1], [0, 0, 1, 1], [], []>} : vector<8x16xf32>, vector<16x128xf32>, vector<8x128xf32> -> vector<8x128xf32>
    %c0_3 = arith.constant 0 : index
    %c0_4 = arith.constant 0 : index
    %3 = vector.load %arg3[%c0_3, %c0_4] : memref<1x128xf32, #tpu.memory_space<vmem>>, vector<1x128xf32>
    %4 = vector.broadcast %3 : vector<1x128xf32> to vector<8x128xf32>
    %5 = arith.addf %2, %4 : vector<8x128xf32>
    %6 = math.tanh %5 : vector<8x128xf32>
    %c0_5 = arith.constant 0 : index
    %c0_6 = arith.constant 0 : index
    %7 = vector.load %arg4[%c0_5, %c0_6] : memref<128x256xf32, #tpu.memory_space<vmem>>, vector<128x256xf32>
    %cst_7 = arith.constant dense<0.000000e+00> : vector<8x256xf32>
    %8 = tpu.matmul %6, %7, %cst_7 {dimension_numbers = #tpu.dot_dimension_numbers<[1], [0], [0], [1], [0, 0, 1, 1], [], []>} : vector<8x128xf32>, vector<128x256xf32>, vector<8x256xf32> -> vector<8x256xf32>
    %c0_8 = arith.constant 0 : index
    %c0_9 = arith.constant 0 : index
    %9 = vector.load %arg5[%c0_8, %c0_9] : memref<1x256xf32, #tpu.memory_space<vmem>>, vector<1x256xf32>
    %10 = vector.broadcast %9 : vector<1x256xf32> to vector<8x256xf32>
    %11 = arith.addf %8, %10 : vector<8x256xf32>
    %12 = math.tanh %11 : vector<8x256xf32>
    %c0_10 = arith.constant 0 : index
    %c0_11 = arith.constant 0 : index
    %13 = vector.load %arg6[%c0_10, %c0_11] : memref<256x8xf32, #tpu.memory_space<vmem>>, vector<256x8xf32>
    %cst_12 = arith.constant dense<0.000000e+00> : vector<8x8xf32>
    %14 = tpu.matmul %12, %13, %cst_12 {dimension_numbers = #tpu.dot_dimension_numbers<[1], [0], [0], [1], [0, 0, 1, 1], [], []>} : vector<8x256xf32>, vector<256x8xf32>, vector<8x8xf32> -> vector<8x8xf32>
    %c0_13 = arith.constant 0 : index
    %c0_14 = arith.constant 0 : index
    %15 = vector.load %arg7[%c0_13, %c0_14] : memref<1x8xf32, #tpu.memory_space<vmem>>, vector<1x8xf32>
    %16 = vector.broadcast %15 : vector<1x8xf32> to vector<8x8xf32>
    %17 = arith.addf %14, %16 : vector<8x8xf32>
    %c0_15 = arith.constant 0 : index
    %c0_16 = arith.constant 0 : index
    %18 = vector.load %arg8[%c0_15, %c0_16] : memref<8x8xf32, #tpu.memory_space<vmem>>, vector<8x8xf32>
    tpu.vector_store %arg8[%c0_15, %c0_16], %17 {strides = array<i32>} : memref<8x8xf32, #tpu.memory_space<vmem>>, vector<8x8xf32>,
    return
  }
  func.func @transform_0(%arg0: i32) -> (i32, i32) {
    %c0_i32 = arith.constant 0 : i32
    %c0_i32_0 = arith.constant 0 : i32
    return %arg0, %c0_i32 : i32, i32
  }
  func.func @transform_1(%arg0: i32) -> (i32, i32) {
    %c0_i32 = arith.constant 0 : i32
    %c0_i32_0 = arith.constant 0 : i32
    %c0_i32_1 = arith.constant 0 : i32
    return %c0_i32, %c0_i32_0 : i32, i32
  }
  func.func @transform_2(%arg0: i32) -> (i32, i32) {
    %c0_i32 = arith.constant 0 : i32
    %c0_i32_0 = arith.constant 0 : i32
    %c0_i32_1 = arith.constant 0 : i32
    return %c0_i32, %c0_i32_0 : i32, i32
  }
  func.func @transform_3(%arg0: i32) -> (i32, i32) {
    %c0_i32 = arith.constant 0 : i32
    %c0_i32_0 = arith.constant 0 : i32
    %c0_i32_1 = arith.constant 0 : i32
    return %c0_i32, %c0_i32_0 : i32, i32
  }
  func.func @transform_4(%arg0: i32) -> (i32, i32) {
    %c0_i32 = arith.constant 0 : i32
    %c0_i32_0 = arith.constant 0 : i32
    %c0_i32_1 = arith.constant 0 : i32
    return %c0_i32, %c0_i32_0 : i32, i32
  }
  func.func @transform_5(%arg0: i32) -> (i32, i32) {
    %c0_i32 = arith.constant 0 : i32
    %c0_i32_0 = arith.constant 0 : i32
    %c0_i32_1 = arith.constant 0 : i32
    return %c0_i32, %c0_i32_0 : i32, i32
  }
  func.func @transform_6(%arg0: i32) -> (i32, i32) {
    %c0_i32 = arith.constant 0 : i32
    %c0_i32_0 = arith.constant 0 : i32
    %c0_i32_1 = arith.constant 0 : i32
    return %c0_i32, %c0_i32_0 : i32, i32
  }
  func.func @transform_7(%arg0: i32) -> (i32, i32) {
    %c0_i32 = arith.constant 0 : i32
    %c0_i32_0 = arith.constant 0 : i32
    return %arg0, %c0_i32 : i32, i32
  }
}

</mosaic_0001>

<llo_original>
// kernel: dueling_forward.1
$region0: #{dueling_forward.1}
  #allocation0 [shape = 'u32[]', space=smem, size = 0x4, offset = 0x4, fixed_abs, tag = 'smem constant byte address 0x4 - core index']
  #allocation1 [shape = 'u32[72,128]{1,0:T(1,128)}', space=vmem, size = 0x9000, scoped, tag = 'internal scratch']
  %s0 = inlined_call_operand.hbm [shape: f32[8,16], index: 0, kind: input, shape index: {}]
  %s1 = inlined_call_operand.vmem [shape: f32[16,128], index: 1, kind: input, shape index: {}]
  %s2 = inlined_call_operand.hbm [shape: f32[1,128], index: 2, kind: input, shape index: {}]
  %s3 = inlined_call_operand.vmem [shape: f32[128,256], index: 3, kind: input, shape index: {}]
  %s4 = inlined_call_operand.vmem [shape: f32[1,256], index: 4, kind: input, shape index: {}]
  %s5 = inlined_call_operand.vmem [shape: f32[256,8], index: 5, kind: input, shape index: {}]
  %s6 = inlined_call_operand.vmem [shape: f32[1,8], index: 6, kind: input, shape index: {}]
  %s7 = inlined_call_operand.vmem [shape: f32[8,8], index: 7, kind: output, shape index: {}]
  %s8 = sld [smem:[#allocation0]]
  $region46: #{dueling_forward.1} parent=0
    _
  %s10 = ssub.s32 1, %s8
  %s11 = scalar_select 0, %s10, %s8
  $region1: #{dueling_forward.1} parent=0
    #allocation2 [shape = 'u8[4096]{0}', space=vmem, size = 0x1000, scoped, tag = 'input window, operand 0, single buffered']
    #allocation3 [shape = 's32[1]{0}', space=sflag, size = 0x4, scoped, tag = 'scoped memory for dueling_forward.1']
    #allocation4 [shape = 'u8[512]{0}', space=vmem, size = 0x400, scoped, tag = 'input window, operand 2, single buffered']
    #allocation5 [shape = 's32[1]{0}', space=sflag, size = 0x4, scoped, tag = 'scoped memory for dueling_forward.1']
    %12 = vsyncpa [#allocation3], 0
    %13 = vsyncpa [#allocation5], 0
    // Predicated region
    $region2: #{dueling_forward.1} parent=1 // pred_check
      _
    $region3: #{dueling_forward.1} parent=1 // pred_check_branch
      %15 = sbr.rel (0) target = $region5
    $region4: #{dueling_forward.1} parent=1 // pred_region
      %17 = vsyncadd [#allocation3], 0
      %s19 = sshll.u32 %s0, 4
      %s20 = int_to_ptr.hbm [resolvable:$true] %s19
      %s21 = sshll.u32 [#allocation2], 4
      %s22 = int_to_ptr.vmem [resolvable:$true] %s21
      %24 = dma.hbm_to_vmem [thread:$0]  %s20, 128, %s22, [#allocation3]
    $region5: #{dueling_forward.1} parent=1 // pred_fallthru
      _
    // Predicated region
    $region6: #{dueling_forward.1} parent=1 // pred_check
      _
    $region7: #{dueling_forward.1} parent=1 // pred_check_branch
      %26 = sbr.rel (0) target = $region9
    $region8: #{dueling_forward.1} parent=1 // pred_region
      _
    $region9: #{dueling_forward.1} parent=1 // pred_fallthru
      _
    // Predicated region
    $region10: #{dueling_forward.1} parent=1 // pred_check
      _
    $region11: #{dueling_forward.1} parent=1 // pred_check_branch
      %28 = sbr.rel (0) target = $region13
    $region12: #{dueling_forward.1} parent=1 // pred_region
      %30 = vsyncadd [#allocation5], 0
      %s32 = sshll.u32 %s2, 4
      %s33 = int_to_ptr.hbm [resolvable:$true] %s32
      %s34 = sshll.u32 [#allocation4], 4
      %s35 = int_to_ptr.vmem [resolvable:$true] %s34
      %37 = dma.hbm_to_vmem [thread:$0]  %s33, 16, %s35, [#allocation5]
    $region13: #{dueling_forward.1} parent=1 // pred_fallthru
      _
    // Predicated region
    $region14: #{dueling_forward.1} parent=1 // pred_check
      _
    $region15: #{dueling_forward.1} parent=1 // pred_check_branch
      %39 = sbr.rel (0) target = $region17
    $region16: #{dueling_forward.1} parent=1 // pred_region
      _
    $region17: #{dueling_forward.1} parent=1 // pred_fallthru
      _
    // Predicated region
    $region18: #{dueling_forward.1} parent=1 // pred_check
      _
    $region19: #{dueling_forward.1} parent=1 // pred_check_branch
      %41 = sbr.rel (0) target = $region21
    $region20: #{dueling_forward.1} parent=1 // pred_region
      _
    $region21: #{dueling_forward.1} parent=1 // pred_fallthru
      _
    // Predicated region
    $region22: #{dueling_forward.1} parent=1 // pred_check
      _
    $region23: #{dueling_forward.1} parent=1 // pred_check_branch
      %43 = sbr.rel (0) target = $region25
    $region24: #{dueling_forward.1} parent=1 // pred_region
      _
    $region25: #{dueling_forward.1} parent=1 // pred_fallthru
      _
    // Predicated region
    $region26: #{dueling_forward.1} parent=1 // pred_check
      _
    $region27: #{dueling_forward.1} parent=1 // pred_check_branch
      %45 = sbr.rel (0) target = $region29
    $region28: #{dueling_forward.1} parent=1 // pred_region
      _
    $region29: #{dueling_forward.1} parent=1 // pred_fallthru
      _
    // Predicated region
    $region30: #{dueling_forward.1} parent=1 // pred_check
      _
    $region31: #{dueling_forward.1} parent=1 // pred_check_branch
      %47 = sbr.rel (0) target = $region33
    $region32: #{dueling_forward.1} parent=1 // pred_region
      %49 = dma.done [#allocation3], 128
    $region33: #{dueling_forward.1} parent=1 // pred_fallthru
      _
    // Predicated region
    $region34: #{dueling_forward.1} parent=1 // pred_check
      _
    $region35: #{dueling_forward.1} parent=1 // pred_check_branch
      %51 = sbr.rel (0) target = $region37
    $region36: #{dueling_forward.1} parent=1 // pred_region
      %53 = dma.done [#allocation5], 16
    $region37: #{dueling_forward.1} parent=1 // pred_fallthru
      _
    %v54 = vld [vmem:[#allocation2] sm:$0xff]
    %v55 = vld [vmem:[%s1] sm:$0xff]
    %v56 = vld [vmem:[%s1 + $0x8] sm:$0xff]
    %v57 = vld [vmem:[#allocation4] sm:$0x1]
    %v59 = vperm.slane %v57, 0
    %vm61 = vcmask 130048
    %v63 = vsel %vm61, %v54, 0
    %65 = vmatpush.msra.mxu0 0.0
    %66 = vmatpush.msra.mxu0 0.0
    %67 = vmatpush.msra.mxu0 0.0
    %68 = vmatpush.msra.mxu0 0.0
    %69 = vmatpush.msra.mxu0 0.0
    %70 = vmatpush.msra.mxu0 0.0
    %71 = vmatpush.msra.mxu0 0.0
    %72 = vmatpush.msra.mxu0 0.0
    %73 = vmatpush.msra.mxu0 0.0
    %74 = vmatpush.msra.mxu0 0.0
    %75 = vmatpush.msra.mxu0 0.0
    %76 = vmatpush.msra.mxu0 0.0
    %77 = vmatpush.msra.mxu0 0.0
    %78 = vmatpush.msra.mxu0 0.0
    %79 = vmatpush.msra.mxu0 %v56
    %80 = vmatpush.msra.mxu0 %v55
    %81 = vmatmul.f32.gmra.mxu0 %v63
    %v82 = vpop.f32.mrf.mxu0
    %v83 = vadd.f32 %v59, %v82
    %84 = vdwg.mxu0
    %v85 = vtanh.pop %v83
    %v86 = vld [vmem:[%s3] sm:$0xff]
    %v87 = vld [vmem:[%s3 + $0x8] sm:$0xff]
    %v88 = vld [vmem:[%s3 + $0x10] sm:$0xff]
    %v89 = vld [vmem:[%s3 + $0x18] sm:$0xff]
    %v90 = vld [vmem:[%s3 + $0x20] sm:$0xff]
    %v91 = vld [vmem:[%s3 + $0x28] sm:$0xff]
    %v92 = vld [vmem:[%s3 + $0x30] sm:$0xff]
    %v93 = vld [vmem:[%s3 + $0x38] sm:$0xff]
    %v94 = vld [vmem:[%s3 + $0x40] sm:$0xff]
    %v95 = vld [vmem:[%s3 + $0x48] sm:$0xff]
    %v96 = vld [vmem:[%s3 + $0x50] sm:$0xff]
    %v97 = vld [vmem:[%s3 + $0x58] sm:$0xff]
    %v98 = vld [vmem:[%s3 + $0x60] sm:$0xff]
    %v99 = vld [vmem:[%s3 + $0x68] sm:$0xff]
    %v100 = vld [vmem:[%s3 + $0x70] sm:$0xff]
    %v101 = vld [vmem:[%s3 + $0x78] sm:$0xff]
    %v102 = vld [vmem:[%s3 + $0x80] sm:$0xff]
    %v103 = vld [vmem:[%s3 + $0x88] sm:$0xff]
    %v104 = vld [vmem:[%s3 + $0x90] sm:$0xff]
    %v105 = vld [vmem:[%s3 + $0x98] sm:$0xff]
    %v106 = vld [vmem:[%s3 + $0xa0] sm:$0xff]
    %v107 = vld [vmem:[%s3 + $0xa8] sm:$0xff]
    %v108 = vld [vmem:[%s3 + $0xb0] sm:$0xff]
    %v109 = vld [vmem:[%s3 + $0xb8] sm:$0xff]
    %v110 = vld [vmem:[%s3 + $0xc0] sm:$0xff]
    %v111 = vld [vmem:[%s3 + $0xc8] sm:$0xff]
    %v112 = vld [vmem:[%s3 + $0xd0] sm:$0xff]
    %v113 = vld [vmem:[%s3 + $0xd8] sm:$0xff]
    %v114 = vld [vmem:[%s3 + $0xe0] sm:$0xff]
    %v115 = vld [vmem:[%s3 + $0xe8] sm:$0xff]
    %v116 = vld [vmem:[%s3 + $0xf0] sm:$0xff]
    %v117 = vld [vmem:[%s3 + $0xf8] sm:$0xff]
    %v118 = vld [vmem:[%s4] sm:$0x3]
    %v120 = vperm.slane %v118, 0
    %v121 = vperm.slane %v118, 1
    %124 = vmatpush.msra.mxu0 %v116
    %125 = vmatpush.msra.mxu0 %v114
    %126 = vmatpush.msra.mxu0 %v112
    %127 = vmatpush.msra.mxu0 %v110
    %128 = vmatpush.msra.mxu0 %v108
    %129 = vmatpush.msra.mxu0 %v106
    %130 = vmatpush.msra.mxu0 %v104
    %131 = vmatpush.msra.mxu0 %v102
    %132 = vmatpush.msra.mxu0 %v100
    %133 = vmatpush.msra.mxu0 %v98
    %134 = vmatpush.msra.mxu0 %v96
    %135 = vmatpush.msra.mxu0 %v94
    %136 = vmatpush.msra.mxu0 %v92
    %137 = vmatpush.msra.mxu0 %v90
    %138 = vmatpush.msra.mxu0 %v88
    %139 = vmatpush.msra.mxu0 %v86
    %140 = vmatmul.f32.gmra.mxu0 %v85
    %v141 = vpop.f32.mrf.mxu0
    %v142 = vadd.f32 %v120, %v141
    %143 = vdwg.mxu0
    %144 = vmatpush.msra.mxu0 %v117
    %145 = vmatpush.msra.mxu0 %v115
    %146 = vmatpush.msra.mxu0 %v113
    %147 = vmatpush.msra.mxu0 %v111
    %148 = vmatpush.msra.mxu0 %v109
    %149 = vmatpush.msra.mxu0 %v107
    %150 = vmatpush.msra.mxu0 %v105
    %151 = vmatpush.msra.mxu0 %v103
    %152 = vmatpush.msra.mxu0 %v101
    %153 = vmatpush.msra.mxu0 %v99
    %154 = vmatpush.msra.mxu0 %v97
    %155 = vmatpush.msra.mxu0 %v95
    %156 = vmatpush.msra.mxu0 %v93
    %157 = vmatpush.msra.mxu0 %v91
    %158 = vmatpush.msra.mxu0 %v89
    %159 = vmatpush.msra.mxu0 %v87
    %160 = vmatmul.f32.gmra.mxu0 %v85
    %v161 = vpop.f32.mrf.mxu0
    %v162 = vadd.f32 %v121, %v161
    %163 = vdwg.mxu0
    %v164 = vtanh.pop %v142
    %v165 = vtanh.pop %v162
    %v166 = vld [vmem:[%s5] sm:$0xff]
    %v167 = vld [vmem:[%s5 + $0x8] sm:$0xff]
    %v168 = vld [vmem:[%s5 + $0x10] sm:$0xff]
    %v169 = vld [vmem:[%s5 + $0x18] sm:$0xff]
    %v170 = vld [vmem:[%s5 + $0x20] sm:$0xff]
    %v171 = vld [vmem:[%s5 + $0x28] sm:$0xff]
    %v172 = vld [vmem:[%s5 + $0x30] sm:$0xff]
    %v173 = vld [vmem:[%s5 + $0x38] sm:$0xff]
    %v174 = vld [vmem:[%s5 + $0x40] sm:$0xff]
    %v175 = vld [vmem:[%s5 + $0x48] sm:$0xff]
    %v176 = vld [vmem:[%s5 + $0x50] sm:$0xff]
    %v177 = vld [vmem:[%s5 + $0x58] sm:$0xff]
    %v178 = vld [vmem:[%s5 + $0x60] sm:$0xff]
    %v179 = vld [vmem:[%s5 + $0x68] sm:$0xff]
    %v180 = vld [vmem:[%s5 + $0x70] sm:$0xff]
    %v181 = vld [vmem:[%s5 + $0x78] sm:$0xff]
    %v182 = vld [vmem:[%s5 + $0x80] sm:$0xff]
    %v183 = vld [vmem:[%s5 + $0x88] sm:$0xff]
    %v184 = vld [vmem:[%s5 + $0x90] sm:$0xff]
    %v185 = vld [vmem:[%s5 + $0x98] sm:$0xff]
    %v186 = vld [vmem:[%s5 + $0xa0] sm:$0xff]
    %v187 = vld [vmem:[%s5 + $0xa8] sm:$0xff]
    %v188 = vld [vmem:[%s5 + $0xb0] sm:$0xff]
    %v189 = vld [vmem:[%s5 + $0xb8] sm:$0xff]
    %v190 = vld [vmem:[%s5 + $0xc0] sm:$0xff]
    %v191 = vld [vmem:[%s5 + $0xc8] sm:$0xff]
    %v192 = vld [vmem:[%s5 + $0xd0] sm:$0xff]
    %v193 = vld [vmem:[%s5 + $0xd8] sm:$0xff]
    %v194 = vld [vmem:[%s5 + $0xe0] sm:$0xff]
    %v195 = vld [vmem:[%s5 + $0xe8] sm:$0xff]
    %v196 = vld [vmem:[%s5 + $0xf0] sm:$0xff]
    %v197 = vld [vmem:[%s5 + $0xf8] sm:$0xff]
    %v198 = vld [vmem:[%s6] sm:$0x1]
    %v200 = vperm.slane %v198, 0
    %202 = vmatpush.msra.mxu0 %v181
    %203 = vmatpush.msra.mxu0 %v180
    %204 = vmatpush.msra.mxu0 %v179
    %205 = vmatpush.msra.mxu0 %v178
    %206 = vmatpush.msra.mxu0 %v177
    %207 = vmatpush.msra.mxu0 %v176
    %208 = vmatpush.msra.mxu0 %v175
    %209 = vmatpush.msra.mxu0 %v174
    %210 = vmatpush.msra.mxu0 %v173
    %211 = vmatpush.msra.mxu0 %v172
    %212 = vmatpush.msra.mxu0 %v171
    %213 = vmatpush.msra.mxu0 %v170
    %214 = vmatpush.msra.mxu0 %v169
    %215 = vmatpush.msra.mxu0 %v168
    %216 = vmatpush.msra.mxu0 %v167
    %217 = vmatpush.msra.mxu0 %v166
    %218 = vmatmul.f32.gmra.mxu0 %v164
    %v219 = vpop.f32.mrf.mxu0
    %v220 = vadd.f32 %v200, %v219
    %221 = vdwg.mxu0
    %222 = vmatpush.msra.mxu0 %v197
    %223 = vmatpush.msra.mxu0 %v196
    %224 = vmatpush.msra.mxu0 %v195
    %225 = vmatpush.msra.mxu0 %v194
    %226 = vmatpush.msra.mxu0 %v193
    %227 = vmatpush.msra.mxu0 %v192
    %228 = vmatpush.msra.mxu0 %v191
    %229 = vmatpush.msra.mxu0 %v190
    %230 = vmatpush.msra.mxu0 %v189
    %231 = vmatpush.msra.mxu0 %v188
    %232 = vmatpush.msra.mxu0 %v187
    %233 = vmatpush.msra.mxu0 %v186
    %234 = vmatpush.msra.mxu0 %v185
    %235 = vmatpush.msra.mxu0 %v184
    %236 = vmatpush.msra.mxu0 %v183
    %237 = vmatpush.msra.mxu0 %v182
    %238 = vmatmul.f32.gmra.mxu0 %v165
    %v239 = vpop.f32.mrf.mxu0
    %v240 = vadd.f32 %v220, %v239
    %241 = vdwg.mxu0
    %vm242 = vcmask 64512
    %243 = vst.msk [vmem:[%s7] sm:$0xff] %vm242, %v240
    // Predicated region
    $region38: #{dueling_forward.1} parent=1 // pred_check
      _
    $region39: #{dueling_forward.1} parent=1 // pred_check_branch
      %245 = sbr.rel (0) target = $region41
    $region40: #{dueling_forward.1} parent=1 // pred_region
      _
    $region41: #{dueling_forward.1} parent=1 // pred_fallthru
      _
    // Predicated region
    $region42: #{dueling_forward.1} parent=1 // pred_check
      _
    $region43: #{dueling_forward.1} parent=1 // pred_check_branch
      %247 = sbr.rel (0) target = $region45
    $region44: #{dueling_forward.1} parent=1 // pred_region
      _
    $region45: #{dueling_forward.1} parent=1 // pred_fallthru
      _
    %248 = vsyncpa [#allocation3], 1
    %249 = vsyncpa [#allocation5], 1

</llo_original>
